<compile_context>
chip_gen: v5e
topology: v5e:2x2
jax: 0.10.0
libtpu: 0.0.40
codegen_flags: <defaults>
</compile_context>

<pallas_src>
import jax
import jax.numpy as jnp
from jax import lax
from jax.experimental import pallas as pl
from jax.experimental.pallas import tpu as pltpu

GUIDE_G = 0.2  # self.g in the PyTorch module
_INV_2G2 = 1.0 / (2.0 * GUIDE_G * GUIDE_G)


def _loss_kernel(text_len_ref, mel_len_ref,        # scalar-prefetch refs (SMEM, int32[B])
                 mel_out_ref, mel_tgt_ref,         # (n_mel, Tt)
                 al0_ref, al1_ref,                 # (Tt, L)  layers n_layers-2 / -1, head 0
                 out_ref):                         # (1, 8, 128) per-batch partial sums
    b = pl.program_id(0)
    tt = pl.program_id(1)

    @pl.when(tt == 0)
    def _():
        out_ref[...] = jnp.zeros_like(out_ref)

    t = mel_len_ref[b]    # this item's mel length   (scalar int32)
    l = text_len_ref[b]   # this item's text length  (scalar int32)

    n_mel, Tt = mel_out_ref.shape
    t0 = tt * Tt          # global frame offset of this time tile

    # ---- masked L1 (mel loss numerator) --------------------------------------
    mo = mel_out_ref[...].astype(jnp.float32)
    mt = mel_tgt_ref[...].astype(jnp.float32)
    frame = lax.broadcasted_iota(jnp.int32, (1, Tt), 1) + t0      # global frame index
    valid_t = frame < t                                           # (1, Tt)
    mel_s = jnp.sum(jnp.where(valid_t, jnp.abs(mo - mt), 0.0))

    # ---- guided-attention loss numerator -------------------------------------
    al = al0_ref[...].astype(jnp.float32) + al1_ref[...].astype(jnp.float32)  # (Tt, L)
    Tt_, L = al.shape
    ii = lax.broadcasted_iota(jnp.int32, (Tt_, 1), 0) + t0        # mel step (global)
    jj = lax.broadcasted_iota(jnp.int32, (1, L), 1)               # text step
    valid_w = (ii < t) & (jj < l)                                 # (Tt, L)
    inv_t = 1.0 / t.astype(jnp.float32)                           # scalar reciprocals
    inv_l = 1.0 / l.astype(jnp.float32)
    diff = jj.astype(jnp.float32) * inv_l - ii.astype(jnp.float32) * inv_t
    w = 1.0 - jnp.exp(-(diff * diff) * _INV_2G2)
    guide_s = jnp.sum(jnp.where(valid_w, al * w, 0.0))

    # ---- lane/sublane-dense partial write (mel -> sublane 0, guide -> sublane 1)
    sub = lax.broadcasted_iota(jnp.int32, (1, 8, 128), 1)
    tile = jnp.where(sub == 0, mel_s, jnp.where(sub == 1, guide_s, 0.0))
    out_ref[...] += tile


@jax.jit
def transformer_loss(mel_out, gate_out, mel_target, gate_target,
                     alignments, text_lengths, mel_lengths):
    B, n_mel, T = mel_out.shape
    NL = alignments.shape[1]
    L = alignments.shape[-1]

    # Time tile: full T when small, else 512 (multiple of 8 and 128 -> legal block dims).
    Tt = T if T <= 512 else 512
    grid_t = pl.cdiv(T, Tt)

    grid_spec = pltpu.PrefetchScalarGridSpec(
        num_scalar_prefetch=2,
        grid=(B, grid_t),
        in_specs=[
            pl.BlockSpec((None, n_mel, Tt), lambda b, tt, tl, ml: (b, 0, tt)),
            pl.BlockSpec((None, n_mel, Tt), lambda b, tt, tl, ml: (b, 0, tt)),
            pl.BlockSpec((None, None, None, Tt, L),
                         lambda b, tt, tl, ml: (b, NL - 2, 0, tt, 0)),
            pl.BlockSpec((None, None, None, Tt, L),
                         lambda b, tt, tl, ml: (b, NL - 1, 0, tt, 0)),
        ],
        out_specs=pl.BlockSpec((1, 8, 128), lambda b, tt, tl, ml: (b, 0, 0)),
    )

    partials = pl.pallas_call(
        _loss_kernel,
        out_shape=jax.ShapeDtypeStruct((B, 8, 128), jnp.float32),
        grid_spec=grid_spec,
        compiler_params=pltpu.CompilerParams(
            dimension_semantics=("parallel", "arbitrary")),
    )(text_lengths, mel_lengths, mel_out, mel_target, alignments, alignments)

    mel_sum = jnp.sum(partials[:, 0, 0])
    guide_sum = jnp.sum(partials[:, 1, 0])

    # ---- gate BCE (tiny, B*T elements) and normalization counts: plain-JAX glue ----
    mel_f = mel_lengths.astype(jnp.float32)
    text_f = text_lengths.astype(jnp.float32)
    mel_count = jnp.sum(mel_f) * n_mel
    bce_count = jnp.sum(mel_f)
    guide_count = 2.0 * jnp.sum(mel_f * text_f)   # 2 layers x 1 head x sum(t_i * l_i)

    x = gate_out.astype(jnp.float32)
    y = gate_target.astype(jnp.float32)
    valid = jnp.arange(T)[None, :] < mel_lengths[:, None]
    bce = jnp.maximum(x, 0.0) - x * y + jnp.log1p(jnp.exp(-jnp.abs(x)))
    bce_sum = jnp.sum(jnp.where(valid, bce, 0.0))

    mel_loss = mel_sum / mel_count
    bce_loss = bce_sum / bce_count
    guide_loss = guide_sum / guide_count
    return mel_loss, bce_loss, guide_loss


def reference_loss(mel_out, gate_out, mel_target, gate_target,
                   alignments, text_lengths, mel_lengths, g=GUIDE_G):
    """Pure-JAX reference matching the PyTorch semantics."""
    B, n_mel, T = mel_out.shape
    L = alignments.shape[-1]
    valid = jnp.arange(T)[None, :] < mel_lengths[:, None]                 # (B, T)
    mel_mask = valid[:, None, :]                                          # (B, 1, T)
    mel_loss = (jnp.sum(jnp.where(mel_mask, jnp.abs(mel_out - mel_target), 0.0))
                / (jnp.sum(mel_lengths).astype(jnp.float32) * n_mel))
    x, y = gate_out, gate_target
    bce = jnp.maximum(x, 0.0) - x * y + jnp.log1p(jnp.exp(-jnp.abs(x)))
    bce_loss = jnp.sum(jnp.where(valid, bce, 0.0)) / jnp.sum(mel_lengths).astype(jnp.float32)

    ti = jnp.arange(T, dtype=jnp.float32)[None, :, None]                  # (1, T, 1)
    tj = jnp.arange(L, dtype=jnp.float32)[None, None, :]                  # (1, 1, L)
    tlen = mel_lengths.astype(jnp.float32)[:, None, None]
    llen = text_lengths.astype(jnp.float32)[:, None, None]
    diff = tj / llen - ti / tlen
    w = 1.0 - jnp.exp(-(diff ** 2) / (2.0 * g ** 2))
    vmask = ((jnp.arange(T)[None, :, None] < mel_lengths[:, None, None]) &
             (jnp.arange(L)[None, None, :] < text_lengths[:, None, None]))
    w = jnp.where(vmask, w, 0.0)
    applied = alignments[:, -2:, 0]                                       # (B, 2, T, L)
    guide_sum = jnp.sum(applied * w[:, None])
    guide_count = 2.0 * jnp.sum((mel_lengths * text_lengths).astype(jnp.float32))
    return mel_loss, bce_loss, guide_sum / guide_count


if __name__ == "__main__":
    B, n_mel, T = 2, 8, 16
    n_layers, n_heads, L = 4, 2, 8

    key = jax.random.PRNGKey(0)
    k1, k2, k3, k4, k5 = jax.random.split(key, 5)

    mel_out = jax.random.normal(k1, (B, n_mel, T), dtype=jnp.float32)
    mel_target = jax.random.normal(k2, (B, n_mel, T), dtype=jnp.float32)
    gate_out = jax.random.normal(k3, (B, T), dtype=jnp.float32)
    gate_target = (jax.random.uniform(k4, (B, T)) > 0.5).astype(jnp.float32)
    alignments = jax.nn.softmax(
        jax.random.normal(k5, (B, n_layers, n_heads, T, L), dtype=jnp.float32), axis=-1)
    mel_lengths = jnp.array([16, 12], dtype=jnp.int32)   # max == T (PyTorch mask convention)
    text_lengths = jnp.array([8, 6], dtype=jnp.int32)

    losses = transformer_loss(mel_out, gate_out, mel_target, gate_target,
                              alignments, text_lengths, mel_lengths)
    losses = jax.block_until_ready(losses)

    ref = reference_loss(mel_out, gate_out, mel_target, gate_target,
                         alignments, text_lengths, mel_lengths)
    for got, want in zip(losses, ref):
        assert jnp.allclose(got, want, rtol=1e-5, atol=1e-5), (got, want)

    print("KERNEL_OK")
</pallas_src>

<mosaic_0001>
module attributes {stable_mosaic.version = 11 : i64} {
  func.func @_loss_kernel(%arg0: i32, %arg1: i32, %arg2: memref<2xi32, #tpu.memory_space<smem>>, %arg3: memref<2xi32, #tpu.memory_space<smem>>, %arg4: memref<1x8x16xf32, #tpu.memory_space<vmem>>, %arg5: memref<1x8x16xf32, #tpu.memory_space<vmem>>, %arg6: memref<1x1x1x16x8xf32, #tpu.memory_space<vmem>>, %arg7: memref<1x1x1x16x8xf32, #tpu.memory_space<vmem>>, %arg8: memref<1x8x128xf32, #tpu.memory_space<vmem>>) attributes {dimension_semantics = [#tpu.dimension_semantics<parallel>, #tpu.dimension_semantics<arbitrary>], iteration_bounds = array<i64: 2, 1>, scalar_prefetch = 2 : i64, scratch_operands = 0 : i64, tpu.core_type = #tpu.core_type<tc>, window_params = [{transform_indices = @transform_0, window_bounds = array<i64: 1, 8, 16>}, {transform_indices = @transform_1, window_bounds = array<i64: 1, 8, 16>}, {transform_indices = @transform_2, window_bounds = array<i64: 1, 1, 1, 16, 8>}, {transform_indices = @transform_3, window_bounds = array<i64: 1, 1, 1, 16, 8>}, {transform_indices = @transform_4, window_bounds = array<i64: 1, 8, 128>}]} {
    %c0_i32 = arith.constant 0 : i32
    %0 = arith.cmpi eq, %arg1, %c0_i32 : i32
    %1 = arith.extui %0 : i1 to i32
    %c0_i32_0 = arith.constant 0 : i32
    %2 = arith.cmpi ne, %1, %c0_i32_0 : i32
    scf.if %2 {
      %cst_32 = arith.constant 0.000000e+00 : f32
      %84 = vector.broadcast %cst_32 : f32 to vector<1x8x128xf32>
      %c0_33 = arith.constant 0 : index
      %c0_34 = arith.constant 0 : index
      %c0_35 = arith.constant 0 : index
      %85 = vector.load %arg8[%c0_33, %c0_34, %c0_35] : memref<1x8x128xf32, #tpu.memory_space<vmem>>, vector<1x8x128xf32>
      tpu.vector_store %arg8[%c0_33, %c0_34, %c0_35], %84 {strides = array<i32>} : memref<1x8x128xf32, #tpu.memory_space<vmem>>, vector<1x8x128xf32>,
    } else {
    }
    %3 = arith.index_cast %arg0 : i32 to index
    %4 = memref.load %arg3[%3] : memref<2xi32, #tpu.memory_space<smem>>
    %5 = arith.index_cast %arg0 : i32 to index
    %6 = memref.load %arg2[%5] : memref<2xi32, #tpu.memory_space<smem>>
    %c16_i32 = arith.constant 16 : i32
    %7 = arith.muli %arg1, %c16_i32 : i32
    %c0 = arith.constant 0 : index
    %c0_1 = arith.constant 0 : index
    %c0_2 = arith.constant 0 : index
    %8 = vector.load %arg4[%c0, %c0_1, %c0_2] : memref<1x8x16xf32, #tpu.memory_space<vmem>>, vector<1x8x16xf32>
    %9 = vector.shape_cast %8 : vector<1x8x16xf32> to vector<8x16xf32>
    %c0_3 = arith.constant 0 : index
    %c0_4 = arith.constant 0 : index
    %c0_5 = arith.constant 0 : index
    %10 = vector.load %arg5[%c0_3, %c0_4, %c0_5] : memref<1x8x16xf32, #tpu.memory_space<vmem>>, vector<1x8x16xf32>
    %11 = vector.shape_cast %10 : vector<1x8x16xf32> to vector<8x16xf32>
    %12 = tpu.iota {dimensions = array<i32: 1>} : vector<1x16xi32>
    %13 = vector.broadcast %7 : i32 to vector<1x16xi32>
    %14 = arith.addi %12, %13 : vector<1x16xi32>
    %15 = vector.broadcast %4 : i32 to vector<1x16xi32>
    %16 = arith.cmpi slt, %14, %15 : vector<1x16xi32>
    %17 = arith.subf %9, %11 : vector<8x16xf32>
    %18 = math.absf %17 : vector<8x16xf32>
    %cst = arith.constant 0.000000e+00 : f32
    %19 = vector.shape_cast %16 : vector<1x16xi1> to vector<1x16xi1>
    %20 = vector.broadcast %19 : vector<1x16xi1> to vector<8x16xi1>
    %21 = vector.broadcast %cst : f32 to vector<8x16xf32>
    %22 = arith.select %20, %18, %21 : vector<8x16xi1>, vector<8x16xf32>
    %23 = vector.shape_cast %22 : vector<8x16xf32> to vector<1x8x16xf32>
    %cst_6 = arith.constant dense<0.000000e+00> : vector<1xf32>
    %24 = vector.multi_reduction <add>, %23, %cst_6 [1, 2] : vector<1x8x16xf32> to vector<1xf32>
    %25 = vector.shape_cast %24 : vector<1xf32> to vector<1x1x1xf32>
    %26 = vector.extract %25[0, 0, 0] : f32 from vector<1x1x1xf32>
    %c0_7 = arith.constant 0 : index
    %c0_8 = arith.constant 0 : index
    %c0_9 = arith.constant 0 : index
    %c0_10 = arith.constant 0 : index
    %c0_11 = arith.constant 0 : index
    %27 = vector.load %arg6[%c0_7, %c0_8, %c0_9, %c0_10, %c0_11] : memref<1x1x1x16x8xf32, #tpu.memory_space<vmem>>, vector<1x1x1x16x8xf32>
    %28 = vector.shape_cast %27 : vector<1x1x1x16x8xf32> to vector<16x8xf32>
    %c0_12 = arith.constant 0 : index
    %c0_13 = arith.constant 0 : index
    %c0_14 = arith.constant 0 : index
    %c0_15 = arith.constant 0 : index
    %c0_16 = arith.constant 0 : index
    %29 = vector.load %arg7[%c0_12, %c0_13, %c0_14, %c0_15, %c0_16] : memref<1x1x1x16x8xf32, #tpu.memory_space<vmem>>, vector<1x1x1x16x8xf32>
    %30 = vector.shape_cast %29 : vector<1x1x1x16x8xf32> to vector<16x8xf32>
    %31 = arith.addf %28, %30 : vector<16x8xf32>
    %32 = tpu.iota {dimensions = array<i32: 0>} : vector<16x1xi32>
    %33 = vector.broadcast %7 : i32 to vector<16x1xi32>
    %34 = arith.addi %32, %33 : vector<16x1xi32>
    %35 = tpu.iota {dimensions = array<i32: 1>} : vector<1x8xi32>
    %36 = vector.broadcast %4 : i32 to vector<16x1xi32>
    %37 = arith.cmpi slt, %34, %36 : vector<16x1xi32>
    %38 = vector.broadcast %6 : i32 to vector<1x8xi32>
    %39 = arith.cmpi slt, %35, %38 : vector<1x8xi32>
    %40 = vector.broadcast %37 : vector<16x1xi1> to vector<16x8xi1>
    %41 = vector.broadcast %39 : vector<1x8xi1> to vector<16x8xi1>
    %42 = arith.andi %40, %41 : vector<16x8xi1>
    %43 = arith.sitofp %4 : i32 to f32
    %cst_17 = arith.constant 1.000000e+00 : f32
    %44 = arith.divf %cst_17, %43 : f32
    %45 = arith.sitofp %6 : i32 to f32
    %cst_18 = arith.constant 1.000000e+00 : f32
    %46 = arith.divf %cst_18, %45 : f32
    %47 = arith.sitofp %35 : vector<1x8xi32> to vector<1x8xf32>
    %48 = vector.broadcast %46 : f32 to vector<1x8xf32>
    %49 = arith.mulf %47, %48 : vector<1x8xf32>
    %50 = arith.sitofp %34 : vector<16x1xi32> to vector<16x1xf32>
    %51 = vector.broadcast %44 : f32 to vector<16x1xf32>
    %52 = arith.mulf %50, %51 : vector<16x1xf32>
    %53 = vector.broadcast %49 : vector<1x8xf32> to vector<16x8xf32>
    %54 = vector.broadcast %52 : vector<16x1xf32> to vector<16x8xf32>
    %55 = arith.subf %53, %54 : vector<16x8xf32>
    %56 = arith.mulf %55, %55 : vector<16x8xf32>
    %cst_19 = arith.constant 0.000000e+00 : f32
    %57 = vector.broadcast %cst_19 : f32 to vector<16x8xf32>
    %58 = arith.subf %57, %56 : vector<16x8xf32>
    %cst_20 = arith.constant 1.250000e+01 : f32
    %59 = vector.broadcast %cst_20 : f32 to vector<16x8xf32>
    %60 = arith.mulf %58, %59 : vector<16x8xf32>
    %61 = math.exp %60 : vector<16x8xf32>
    %cst_21 = arith.constant 1.000000e+00 : f32
    %62 = vector.broadcast %cst_21 : f32 to vector<16x8xf32>
    %63 = arith.subf %62, %61 : vector<16x8xf32>
    %64 = arith.mulf %31, %63 : vector<16x8xf32>
    %cst_22 = arith.constant 0.000000e+00 : f32
    %65 = vector.broadcast %cst_22 : f32 to vector<16x8xf32>
    %66 = arith.select %42, %64, %65 : vector<16x8xi1>, vector<16x8xf32>
    %67 = vector.shape_cast %66 : vector<16x8xf32> to vector<1x16x8xf32>
    %cst_23 = arith.constant dense<0.000000e+00> : vector<1xf32>
    %68 = vector.multi_reduction <add>, %67, %cst_23 [1, 2] : vector<1x16x8xf32> to vector<1xf32>
    %69 = vector.shape_cast %68 : vector<1xf32> to vector<1x1x1xf32>
    %70 = vector.extract %69[0, 0, 0] : f32 from vector<1x1x1xf32>
    %71 = tpu.iota {dimensions = array<i32: 1>} : vector<1x8x128xi32>
    %c0_i32_24 = arith.constant 0 : i32
    %72 = vector.broadcast %c0_i32_24 : i32 to vector<1x8x128xi32>
    %73 = arith.cmpi eq, %71, %72 : vector<1x8x128xi32>
    %c1_i32 = arith.constant 1 : i32
    %74 = vector.broadcast %c1_i32 : i32 to vector<1x8x128xi32>
    %75 = arith.cmpi eq, %71, %74 : vector<1x8x128xi32>
    %cst_25 = arith.constant 0.000000e+00 : f32
    %76 = vector.broadcast %70 : f32 to vector<1x8x128xf32>
    %77 = vector.broadcast %cst_25 : f32 to vector<1x8x128xf32>
    %78 = arith.select %75, %76, %77 : vector<1x8x128xi1>, vector<1x8x128xf32>
    %79 = vector.broadcast %26 : f32 to vector<1x8x128xf32>
    %80 = arith.select %73, %79, %78 : vector<1x8x128xi1>, vector<1x8x128xf32>
    %c0_26 = arith.constant 0 : index
    %c0_27 = arith.constant 0 : index
    %c0_28 = arith.constant 0 : index
    %81 = vector.load %arg8[%c0_26, %c0_27, %c0_28] : memref<1x8x128xf32, #tpu.memory_space<vmem>>, vector<1x8x128xf32>
    %82 = arith.addf %81, %80 : vector<1x8x128xf32>
    %c0_29 = arith.constant 0 : index
    %c0_30 = arith.constant 0 : index
    %c0_31 = arith.constant 0 : index
    %83 = vector.load %arg8[%c0_29, %c0_30, %c0_31] : memref<1x8x128xf32, #tpu.memory_space<vmem>>, vector<1x8x128xf32>
    tpu.vector_store %arg8[%c0_29, %c0_30, %c0_31], %82 {strides = array<i32>} : memref<1x8x128xf32, #tpu.memory_space<vmem>>, vector<1x8x128xf32>,
    return
  }
  func.func @transform_0(%arg0: i32, %arg1: i32, %arg2: memref<2xi32, #tpu.memory_space<smem>>, %arg3: memref<2xi32, #tpu.memory_space<smem>>) -> (i32, i32, i32) {
    %c0_i32 = arith.constant 0 : i32
    %c0_i32_0 = arith.constant 0 : i32
    return %arg0, %c0_i32, %arg1 : i32, i32, i32
  }
  func.func @transform_1(%arg0: i32, %arg1: i32, %arg2: memref<2xi32, #tpu.memory_space<smem>>, %arg3: memref<2xi32, #tpu.memory_space<smem>>) -> (i32, i32, i32) {
    %c0_i32 = arith.constant 0 : i32
    %c0_i32_0 = arith.constant 0 : i32
    return %arg0, %c0_i32, %arg1 : i32, i32, i32
  }
  func.func @transform_2(%arg0: i32, %arg1: i32, %arg2: memref<2xi32, #tpu.memory_space<smem>>, %arg3: memref<2xi32, #tpu.memory_space<smem>>) -> (i32, i32, i32, i32, i32) {
    %c2_i32 = arith.constant 2 : i32
    %c0_i32 = arith.constant 0 : i32
    %c0_i32_0 = arith.constant 0 : i32
    %c0_i32_1 = arith.constant 0 : i32
    return %arg0, %c2_i32, %c0_i32, %arg1, %c0_i32_0 : i32, i32, i32, i32, i32
  }
  func.func @transform_3(%arg0: i32, %arg1: i32, %arg2: memref<2xi32, #tpu.memory_space<smem>>, %arg3: memref<2xi32, #tpu.memory_space<smem>>) -> (i32, i32, i32, i32, i32) {
    %c3_i32 = arith.constant 3 : i32
    %c0_i32 = arith.constant 0 : i32
    %c0_i32_0 = arith.constant 0 : i32
    %c0_i32_1 = arith.constant 0 : i32
    return %arg0, %c3_i32, %c0_i32, %arg1, %c0_i32_0 : i32, i32, i32, i32, i32
  }
  func.func @transform_4(%arg0: i32, %arg1: i32, %arg2: memref<2xi32, #tpu.memory_space<smem>>, %arg3: memref<2xi32, #tpu.memory_space<smem>>) -> (i32, i32, i32) {
    %c0_i32 = arith.constant 0 : i32
    %c0_i32_0 = arith.constant 0 : i32
    %c0_i32_1 = arith.constant 0 : i32
    return %arg0, %c0_i32, %c0_i32_0 : i32, i32, i32
  }
}

</mosaic_0001>

<llo_original>
// kernel: transformer_loss.1
$region0: #{transformer_loss.1}
  #allocation0 [shape = 'u32[]', space=smem, size = 0x4, offset = 0x4, fixed_abs, tag = 'smem constant byte address 0x4 - core index']
  #allocation1 [shape = 'u32[72,128]{1,0:T(1,128)}', space=vmem, size = 0x9000, scoped, tag = 'internal scratch']
  #allocation2 [shape = 's32[1]{0}', space=sflag, size = 0x4, scoped, tag = 'scoped memory for transformer_loss.1']
  #allocation3 [shape = 'u8[512]{0}', space=smem, size = 0x200, scoped, tag = 'prefetched SMEM operand 0']
  #allocation4 [shape = 'u8[512]{0}', space=smem, size = 0x200, scoped, tag = 'prefetched SMEM operand 1']
  %s0 = inlined_call_operand.vmem [shape: s32[2], index: 0, kind: input, shape index: {}]
  %s1 = inlined_call_operand.vmem [shape: s32[2], index: 1, kind: input, shape index: {}]
  %s2 = inlined_call_operand.vmem [shape: f32[2,8,16], index: 2, kind: input, shape index: {}]
  %s3 = inlined_call_operand.vmem [shape: f32[2,8,16], index: 3, kind: input, shape index: {}]
  %s4 = inlined_call_operand.vmem [shape: f32[2,4,2,16,8], index: 4, kind: input, shape index: {}, may-alias: {4,5}]
  %s5 = inlined_call_operand.vmem [shape: f32[2,4,2,16,8], index: 5, kind: input, shape index: {}, may-alias: {4,5}]
  %s6 = inlined_call_operand.vmem [shape: f32[2,8,128], index: 6, kind: output, shape index: {}]
  %s7 = sld [smem:[#allocation0]]
  $region53: #{transformer_loss.1} parent=0
    _
  %s9 = ssub.s32 1, %s7
  %s10 = scalar_select 0, %s9, %s7
  %s12 = sshll.u32 %s0, 4
  %s13 = int_to_ptr.vmem [resolvable:$true] %s12
  %15 = dma.vmem_to_smem %s13, 16, [#allocation3], [#allocation2]
  %s17 = sshll.u32 %s1, 4
  %s18 = int_to_ptr.vmem [resolvable:$true] %s17
  %20 = dma.vmem_to_smem %s18, 16, [#allocation4], [#allocation2]
  %22 = dma.done [#allocation2], 32
  %23 = sfence
  loop: start=0, step=1, limit=4
  $region2: #{transformer_loss.1} parent=0 // loop_pre_header
    _
  $region3: #{transformer_loss.1} parent=0 // loop_header
    %s25 = sphi 0, %s29
    %p26 = scmp.ge.s32.totalorder %s25, 4
    %s32 = sphi 0, %s44
    %s33 = sphi 0, %s40
    %s34 = sphi 0, %s32
    %s35 = sphi 0, %s33
    %s36 = sphi 0, %s34
    %s37 = sphi 0, %s35
    %s49 = sphi 0, %s51
    %s52 = sphi 0, %s49
    %s53 = sphi 0, %s52
    %s69 = sphi 0, %s53
    %s77 = sphi 0, %s79
    %s80 = sphi 0, %s77
    %s81 = sphi 0, %s80
    %s97 = sphi 0, %s81
    %s105 = sphi 0, %s107
    %s108 = sphi 0, %s105
    %s109 = sphi 0, %s108
    %s125 = sphi 0, %s109
    %s133 = sphi 0, %s135
    %s136 = sphi 0, %s133
    %s137 = sphi 0, %s136
    %s153 = sphi 0, %s137
    %s159 = sphi 0, %s161
    %s162 = sphi 0, %s159
    %s163 = sphi 0, %s162
    %s179 = sphi 0, %s163
  $region4: #{transformer_loss.1} parent=0 // loop_header_branch
    %28 = sbr.rel (%p26) target = $region8
  $region5: #{transformer_loss.1} parent=0 // loop_body
    %s30 = ssub.s32 %s25, 1
    %s31 = ssub.s32 %s25, 2
    %s38 = sadd.s32 1, %s33
    %p39 = scmp.ge.s32.totalorder %s38, 1
    %s40 = scalar_select %p39, 0, %s38
    %s41 = sadd.s32 1, %s32
    %s42 = scalar_select %p39, %s41, %s32
    %p43 = scmp.ge.s32.totalorder %s42, 2
    %s44 = scalar_select %p43, 0, %s42
    %s45 = ssub.s32 %s32, %s44
    %s46 = ssub.s32 %s33, %s40
    %s47 = sor.u32 %s45, %s46
    %p48 = scmp.eq.s32.totalorder %s47, 0
    %s50 = sadd.s32 %s49, 1
    %s51 = scalar_select %p48, %s49, %s50
    %p54 = pneg %p48
    %p55 = scmp.eq.s32.totalorder %s25, 1
    %p56 = por %p54, %p55
    %p57 = scmp.ne.s32.totalorder %s49, %s52
    %p58 = scmp.eq.s32.totalorder %s25, 0
    %p59 = por %p57, %p58
    %p60 = scmp.ne.s32.totalorder %s49, %s52
    %p61 = scmp.eq.s32.totalorder %s30, 1
    %p62 = por %p60, %p61
    %p63 = scmp.ne.s32.totalorder %s52, %s53
    %p64 = scmp.eq.s32.totalorder %s30, 0
    %p65 = por %p63, %p64
    %p66 = scmp.ne.s32.totalorder %s52, %s53
    %p67 = scmp.eq.s32.totalorder %s31, 1
    %p68 = por %p66, %p67
    %p70 = scmp.ne.s32.totalorder %s53, %s69
    %p71 = scmp.eq.s32.totalorder %s31, 0
    %p72 = por %p70, %p71
    %s73 = ssub.s32 %s32, %s44
    %s74 = ssub.s32 %s33, %s40
    %s75 = sor.u32 %s73, %s74
    %p76 = scmp.eq.s32.totalorder %s75, 0
    %s78 = sadd.s32 %s77, 1
    %s79 = scalar_select %p76, %s77, %s78
    %p82 = pneg %p76
    %p83 = scmp.eq.s32.totalorder %s25, 1
    %p84 = por %p82, %p83
    %p85 = scmp.ne.s32.totalorder %s77, %s80
    %p86 = scmp.eq.s32.totalorder %s25, 0
    %p87 = por %p85, %p86
    %p88 = scmp.ne.s32.totalorder %s77, %s80
    %p89 = scmp.eq.s32.totalorder %s30, 1
    %p90 = por %p88, %p89
    %p91 = scmp.ne.s32.totalorder %s80, %s81
    %p92 = scmp.eq.s32.totalorder %s30, 0
    %p93 = por %p91, %p92
    %p94 = scmp.ne.s32.totalorder %s80, %s81
    %p95 = scmp.eq.s32.totalorder %s31, 1
    %p96 = por %p94, %p95
    %p98 = scmp.ne.s32.totalorder %s81, %s97
    %p99 = scmp.eq.s32.totalorder %s31, 0
    %p100 = por %p98, %p99
    %s101 = ssub.s32 %s32, %s44
    %s102 = ssub.s32 %s33, %s40
    %s103 = sor.u32 %s101, %s102
    %p104 = scmp.eq.s32.totalorder %s103, 0
    %s106 = sadd.s32 %s105, 1
    %s107 = scalar_select %p104, %s105, %s106
    %p110 = pneg %p104
    %p111 = scmp.eq.s32.totalorder %s25, 1
    %p112 = por %p110, %p111
    %p113 = scmp.ne.s32.totalorder %s105, %s108
    %p114 = scmp.eq.s32.totalorder %s25, 0
    %p115 = por %p113, %p114
    %p116 = scmp.ne.s32.totalorder %s105, %s108
    %p117 = scmp.eq.s32.totalorder %s30, 1
    %p118 = por %p116, %p117
    %p119 = scmp.ne.s32.totalorder %s108, %s109
    %p120 = scmp.eq.s32.totalorder %s30, 0
    %p121 = por %p119, %p120
    %p122 = scmp.ne.s32.totalorder %s108, %s109
    %p123 = scmp.eq.s32.totalorder %s31, 1
    %p124 = por %p122, %p123
    %p126 = scmp.ne.s32.totalorder %s109, %s125
    %p127 = scmp.eq.s32.totalorder %s31, 0
    %p128 = por %p126, %p127
    %s129 = ssub.s32 %s32, %s44
    %s130 = ssub.s32 %s33, %s40
    %s131 = sor.u32 %s129, %s130
    %p132 = scmp.eq.s32.totalorder %s131, 0
    %s134 = sadd.s32 %s133, 1
    %s135 = scalar_select %p132, %s133, %s134
    %p138 = pneg %p132
    %p139 = scmp.eq.s32.totalorder %s25, 1
    %p140 = por %p138, %p139
    %p141 = scmp.ne.s32.totalorder %s133, %s136
    %p142 = scmp.eq.s32.totalorder %s25, 0
    %p143 = por %p141, %p142
    %p144 = scmp.ne.s32.totalorder %s133, %s136
    %p145 = scmp.eq.s32.totalorder %s30, 1
    %p146 = por %p144, %p145
    %p147 = scmp.ne.s32.totalorder %s136, %s137
    %p148 = scmp.eq.s32.totalorder %s30, 0
    %p149 = por %p147, %p148
    %p150 = scmp.ne.s32.totalorder %s136, %s137
    %p151 = scmp.eq.s32.totalorder %s31, 1
    %p152 = por %p150, %p151
    %p154 = scmp.ne.s32.totalorder %s137, %s153
    %p155 = scmp.eq.s32.totalorder %s31, 0
    %p156 = por %p154, %p155
    %s157 = ssub.s32 %s32, %s44
    %p158 = scmp.eq.s32.totalorder %s157, 0
    %s160 = sadd.s32 %s159, 1
    %s161 = scalar_select %p158, %s159, %s160
    %p164 = pneg %p158
    %p165 = scmp.eq.s32.totalorder %s25, 1
    %p166 = por %p164, %p165
    %p167 = scmp.ne.s32.totalorder %s159, %s162
    %p168 = scmp.eq.s32.totalorder %s25, 0
    %p169 = por %p167, %p168
    %p170 = scmp.ne.s32.totalorder %s159, %s162
    %p171 = scmp.eq.s32.totalorder %s30, 1
    %p172 = por %p170, %p171
    %p173 = scmp.ne.s32.totalorder %s162, %s163
    %p174 = scmp.eq.s32.totalorder %s30, 0
    %p175 = por %p173, %p174
    %p176 = scmp.ne.s32.totalorder %s162, %s163
    %p177 = scmp.eq.s32.totalorder %s31, 1
    %p178 = por %p176, %p177
    %p180 = scmp.ne.s32.totalorder %s163, %s179
    %p181 = scmp.eq.s32.totalorder %s31, 0
    %p182 = por %p180, %p181
    %p183 = scmp.le.s32.totalorder 1, %s25
    %p184 = scmp.lt.s32.totalorder %s25, 3
    %p185 = pnand %p183, %p184
    %p186 = pneg %p185
    // Predicated region
    $region9: #{transformer_loss.1} parent=5 // pred_check
      _
    $region10: #{transformer_loss.1} parent=5 // pred_check_branch
      %188 = sbr.rel (%p185) target = $region12
    $region11: #{transformer_loss.1} parent=5 // pred_region
      %s189 = ssub.s32 %s25, 1
    $region12: #{transformer_loss.1} parent=5 // pred_fallthru
      _
    %p190 = scmp.lt.s32.totalorder %s25, 2
    // Predicated region
    $region13: #{transformer_loss.1} parent=5 // pred_check
      %p191 = pneg %p190
    $region14: #{transformer_loss.1} parent=5 // pred_check_branch
      %193 = sbr.rel (%p191) target = $region16
    $region15: #{transformer_loss.1} parent=5 // pred_region
      // Predicated region
      $region17: #{transformer_loss.1} parent=15 // pred_check
        %p194 = pneg %p59
      $region18: #{transformer_loss.1} parent=15 // pred_check_branch
        %196 = sbr.rel (%p194) target = $region20
      $region19: #{transformer_loss.1} parent=15 // pred_region
        %p197 = scmp.lt.s32.totalorder %s32, 1
        %s198 = scalar_select %p197, %s32, 1
        %p199 = scmp.lt.s32.totalorder %s33, 0
        %s200 = scalar_select %p199, %s33, 0
        %s201 = sadd.s32 %s200, %s198
        %s202 = smul.addr %s201, 8
        %s203 = scalar_lea.vmem %s2, %s202
      $region20: #{transformer_loss.1} parent=15 // pred_fallthru
        _
      // Predicated region
      $region21: #{transformer_loss.1} parent=15 // pred_check
        %p204 = pneg %p87
      $region22: #{transformer_loss.1} parent=15 // pred_check_branch
        %206 = sbr.rel (%p204) target = $region24
      $region23: #{transformer_loss.1} parent=15 // pred_region
        %p207 = scmp.lt.s32.totalorder %s32, 1
        %s208 = scalar_select %p207, %s32, 1
        %p209 = scmp.lt.s32.totalorder %s33, 0
        %s210 = scalar_select %p209, %s33, 0
        %s211 = sadd.s32 %s210, %s208
        %s212 = smul.addr %s211, 8
        %s213 = scalar_lea.vmem %s3, %s212
      $region24: #{transformer_loss.1} parent=15 // pred_fallthru
        _
      // Predicated region
      $region25: #{transformer_loss.1} parent=15 // pred_check
        %p214 = pneg %p115
      $region26: #{transformer_loss.1} parent=15 // pred_check_branch
        %216 = sbr.rel (%p214) target = $region28
      $region27: #{transformer_loss.1} parent=15 // pred_region
        %s217 = smul.u32 2, %s33
        %p218 = scmp.lt.s32.totalorder %s32, 1
        %s219 = scalar_select %p218, %s32, 1
        %p220 = scmp.lt.s32.totalorder %s217, 1
        %s221 = scalar_select %p220, %s217, 1
        %s222 = sadd.s32 %s221, 8
        %s223 = smul.addr %s219, 16
        %s224 = sadd.s32 %s222, %s223
        %s225 = smul.addr %s224, 8
        %s226 = scalar_lea.vmem %s4, %s225
        %s227 = smul.u32 2, %s33
      $region28: #{transformer_loss.1} parent=15 // pred_fallthru
        _
      // Predicated region
      $region29: #{transformer_loss.1} parent=15 // pred_check
        %p228 = pneg %p143
      $region30: #{transformer_loss.1} parent=15 // pred_check_branch
        %230 = sbr.rel (%p228) target = $region32
      $region31: #{transformer_loss.1} parent=15 // pred_region
        %s231 = smul.u32 2, %s33
        %p232 = scmp.lt.s32.totalorder %s32, 1
        %s233 = scalar_select %p232, %s32, 1
        %p234 = scmp.lt.s32.totalorder %s231, 1
        %s235 = scalar_select %p234, %s231, 1
        %s236 = sadd.s32 %s235, 12
        %s237 = smul.addr %s233, 16
        %s238 = sadd.s32 %s236, %s237
        %s239 = smul.addr %s238, 8
        %s240 = scalar_lea.vmem %s5, %s239
        %s241 = smul.u32 2, %s33
      $region32: #{transformer_loss.1} parent=15 // pred_fallthru
        _
    $region16: #{transformer_loss.1} parent=5 // pred_fallthru
      _
    %p242 = scmp.le.s32.totalorder 1, %s25
    %p243 = scmp.lt.s32.totalorder %s25, 3
    %p244 = pnand %p242, %p243
    %p245 = pneg %p244
    // Predicated region
    $region33: #{transformer_loss.1} parent=5 // pred_check
      _
    $region34: #{transformer_loss.1} parent=5 // pred_check_branch
      %247 = sbr.rel (%p244) target = $region36
    $region35: #{transformer_loss.1} parent=5 // pred_region
      %s248 = ssub.s32 %s25, 1
      %p249 = scmp.lt.s32.totalorder %s34, 1
      %s250 = scalar_select %p249, %s34, 1
      %p251 = scmp.lt.s32.totalorder %s35, 0
      %s252 = scalar_select %p251, %s35, 0
      %s253 = sadd.s32 %s252, %s250
      %s254 = smul.addr %s253, 8
      %s255 = scalar_lea.vmem %s2, %s254
      %p256 = pneg %p65
      %p257 = pneg %p62
      %p258 = scmp.lt.s32.totalorder %s34, 1
      %s259 = scalar_select %p258, %s34, 1
      %p260 = scmp.lt.s32.totalorder %s35, 0
      %s261 = scalar_select %p260, %s35, 0
      %s262 = sadd.s32 %s261, %s259
      %s263 = smul.addr %s262, 8
      %s264 = scalar_lea.vmem %s3, %s263
      %p265 = pneg %p93
      %p266 = pneg %p90
      %s267 = smul.u32 2, %s35
      %p268 = scmp.lt.s32.totalorder %s34, 1
      %s269 = scalar_select %p268, %s34, 1
      %p270 = scmp.lt.s32.totalorder %s267, 1
      %s271 = scalar_select %p270, %s267, 1
      %s272 = sadd.s32 %s271, 8
      %s273 = smul.addr %s269, 16
      %s274 = sadd.s32 %s272, %s273
      %s275 = smul.addr %s274, 8
      %s276 = scalar_lea.vmem %s4, %s275
      %p277 = pneg %p121
      %p278 = pneg %p118
      %s279 = smul.u32 2, %s35
      %p280 = scmp.lt.s32.totalorder %s34, 1
      %s281 = scalar_select %p280, %s34, 1
      %p282 = scmp.lt.s32.totalorder %s279, 1
      %s283 = scalar_select %p282, %s279, 1
      %s284 = sadd.s32 %s283, 12
      %s285 = smul.addr %s281, 16
      %s286 = sadd.s32 %s284, %s285
      %s287 = smul.addr %s286, 8
      %s288 = scalar_lea.vmem %s5, %s287
      %p289 = pneg %p149
      %p290 = pneg %p146
      %p291 = pneg %p175
      %p292 = pneg %p172
      %p293 = scmp.lt.s32.totalorder %s34, 1
      %s294 = scalar_select %p293, %s34, 1
      %s295 = smul.addr %s294, 8
      %s296 = scalar_lea.vmem %s6, %s295
      %p297 = scmp.lt.s32.totalorder %s34, 1
      %s298 = scalar_select %p297, %s34, 1
      %p299 = scmp.lt.s32.totalorder %s35, 0
      %s300 = scalar_select %p299, %s35, 0
      %s301 = sadd.s32 %s300, %s298
      %s302 = smul.addr %s301, 8
      %s303 = scalar_lea.vmem %s2, %s302
      %p304 = scmp.lt.s32.totalorder %s34, 1
      %s305 = scalar_select %p304, %s34, 1
      %p306 = scmp.lt.s32.totalorder %s35, 0
      %s307 = scalar_select %p306, %s35, 0
      %s308 = sadd.s32 %s307, %s305
      %s309 = smul.addr %s308, 8
      %s310 = scalar_lea.vmem %s3, %s309
      %s311 = smul.u32 2, %s35
      %p312 = scmp.lt.s32.totalorder %s34, 1
      %s313 = scalar_select %p312, %s34, 1
      %p314 = scmp.lt.s32.totalorder %s311, 1
      %s315 = scalar_select %p314, %s311, 1
      %s316 = sadd.s32 %s315, 8
      %s317 = smul.addr %s313, 16
      %s318 = sadd.s32 %s316, %s317
      %s319 = smul.addr %s318, 8
      %s320 = scalar_lea.vmem %s4, %s319
      %s321 = smul.u32 2, %s35
      %s322 = smul.u32 2, %s35
      %p323 = scmp.lt.s32.totalorder %s34, 1
      %s324 = scalar_select %p323, %s34, 1
      %p325 = scmp.lt.s32.totalorder %s322, 1
      %s326 = scalar_select %p325, %s322, 1
      %s327 = sadd.s32 %s326, 12
      %s328 = smul.addr %s324, 16
      %s329 = sadd.s32 %s327, %s328
      %s330 = smul.addr %s329, 8
      %s331 = scalar_lea.vmem %s5, %s330
      %s332 = smul.u32 2, %s35
      %p333 = scmp.lt.s32.totalorder %s34, 1
      %s334 = scalar_select %p333, %s34, 1
      %s335 = smul.addr %s334, 8
      %s336 = scalar_lea.vmem %s6, %s335
      %p337 = scmp.eq.s32.totalorder %s35, 0
      // Predicated region
      $region37: #{transformer_loss.1} parent=35 // pred_check
        %p338 = pneg %p337
      $region38: #{transformer_loss.1} parent=35 // pred_check_branch
        %340 = sbr.rel (%p338) target = $region40
      $region39: #{transformer_loss.1} parent=35 // pred_region
        %341 = vst [vmem:[%s336] sm:$0xff] 0.0
      $region40: #{transformer_loss.1} parent=35 // pred_fallthru
        _
      %s342 = sld [smem:[#allocation4 + %s34]]
      %s343 = sld [smem:[#allocation3 + %s34]]
      %s344 = smul.u32 %s35, 16
      %v345 = vld [vmem:[%s303] sm:$0xff]
      %v346 = vld [vmem:[%s310] sm:$0xff]
      %v347 = vlaneseq
      %v348 = vand.u32 %v347, 127
      %v349 = vstv %s344
      %v350 = vadd.s32 %v348, %v349
      %v351 = vstv %s342
      %vm352 = vcmp.lt.s32.totalorder %v350, %v351
      %v353 = vsub.f32 %v345, %v346
      %v354 = vand.u32 2147483647, %v353
      %v355 = vsel %vm352, 1, 0
      %vm356 = vcmp.eq.s32.totalorder %v355, 1
      %v357 = vsel %vm356, %v354, 0.0
      %vm358 = vcmask 130048
      %v359 = vsel %vm358, %v357, 0.0
      %360 = vadd.xlane.f32.xlu0 %v359
      %v361 = vpop.xlane.xlu0 %360
      %v362 = vrot.slane %v361, 4
      %v363 = vadd.f32 %v361, %v362
      %v364 = vrot.slane %v363, 2
      %v365 = vadd.f32 %v363, %v364
      %v366 = vrot.slane %v365, 1
      %v367 = vadd.f32 %v365, %v366
      %s368 = vtos %v367
      %v369 = vld [vmem:[%s320] sm:$0xff]
      %v370 = vld [vmem:[%s320 + $0x8] sm:$0xff]
      %v371 = vld [vmem:[%s331] sm:$0xff]
      %v372 = vld [vmem:[%s331 + $0x8] sm:$0xff]
      %v373 = vadd.f32 %v369, %v371
      %v374 = vadd.f32 %v370, %v372
      %v375 = vlaneseq
      %v376 = vshrl.u32 %v375, 7
      %v377 = vadd.s32 %v376, 8
      %v378 = vadd.s32 %v376, %v349
      %v379 = vadd.s32 %v377, %v349
      %vm380 = vcmp.lt.s32.totalorder %v378, %v351
      %vm381 = vcmp.lt.s32.totalorder %v379, %v351
      %v382 = vstv %s343
      %vm383 = vcmp.lt.s32.totalorder %v348, %v382
      %v384 = vsel %vm380, 1, 0
      %v385 = vsel %vm381, 1, 0
      %vm386 = vcmp.eq.s32.totalorder %v384, 1
      %vm387 = vcmp.eq.s32.totalorder %v385, 1
      %v388 = vsel %vm383, 1, 0
      %vm389 = vcmp.eq.s32.totalorder %v388, 1
      %vm390 = vmand %vm386, %vm389
      %vm391 = vmand %vm387, %vm389
      %s392 = scvt.s32.f32 %s342
      %v393 = vstv %s392
      %v394 = vrcp.pop %v393
      %v395 = vmul.f32 %v393, %v394
      %v396 = vsub.f32 1.0, %v395
      %v397 = vmul.f32 %v394, %v396
      %v398 = vadd.f32 %v394, %v397
      %vm399 = vweird.f32 %v393
      %vm400 = vweird.f32 %v394
      %vm401 = vmor %vm399, %vm400
      %v402 = vsel %vm401, %v394, %v398
      %v403 = vand.u32 2147483647, %v393
      %vm404 = vcmp.eq.f32.partialorder %v403, 8.507059e+37
      %v405 = vand.u32 %v393, 2147483648
      %v406 = vor.u32 1.1754944e-38, %v405
      %v407 = vsel %vm404, %v406, %v402
      %s408 = vtos %v407
      %s409 = scvt.s32.f32 %s343
      %v410 = vstv %s409
      %v411 = vrcp.pop %v410
      %v412 = vmul.f32 %v410, %v411
      %v413 = vsub.f32 1.0, %v412
      %v414 = vmul.f32 %v411, %v413
      %v415 = vadd.f32 %v411, %v414
      %vm416 = vweird.f32 %v410
      %vm417 = vweird.f32 %v411
      %vm418 = vmor %vm416, %vm417
      %v419 = vsel %vm418, %v411, %v415
      %v420 = vand.u32 2147483647, %v410
      %vm421 = vcmp.eq.f32.partialorder %v420, 8.507059e+37
      %v422 = vand.u32 %v410, 2147483648
      %v423 = vor.u32 1.1754944e-38, %v422
      %v424 = vsel %vm421, %v423, %v419
      %s425 = vtos %v424
      %v426 = vcvt.s32.f32 %v348
      %v427 = vstv %s425
      %v428 = vmul.f32 %v426, %v427
      %v429 = vcvt.s32.f32 %v378
      %v430 = vcvt.s32.f32 %v379
      %v431 = vstv %s408
      %v432 = vmul.f32 %v429, %v431
      %v433 = vmul.f32 %v430, %v431
      %v434 = vsub.f32 %v428, %v432
      %v435 = vsub.f32 %v428, %v433
      %v436 = vmul.f32 %v434, %v434
      %v437 = vmul.f32 %v435, %v435
      %v438 = vsub.f32 0.0, %v436
      %v439 = vsub.f32 0.0, %v437
      %v440 = vmul.f32 %v438, 12.5
      %v441 = vmul.f32 %v439, 12.5
      %v442 = vmul.f32 %v440, 1.442695
      %v443 = vpow.pop %v442
      %v444 = vmul.f32 %v441, 1.442695
      %v445 = vpow.pop %v444
      %v446 = vsub.f32 1.0, %v443
      %v447 = vsub.f32 1.0, %v445
      %v448 = vmul.f32 %v373, %v446
      %v449 = vmul.f32 %v374, %v447
      %v450 = vsel %vm390, %v448, 0.0
      %v451 = vsel %vm391, %v449, 0.0
      %vm452 = vcmask 64512
      %v453 = vsel %vm452, %v450, 0.0
      %v454 = vsel %vm452, %v451, 0.0
      %v455 = vadd.f32 %v453, %v454
      %456 = vadd.xlane.f32.xlu0 %v455
      %v457 = vpop.xlane.xlu0 %456
      %v458 = vrot.slane %v457, 4
      %v459 = vadd.f32 %v457, %v458
      %v460 = vrot.slane %v459, 2
      %v461 = vadd.f32 %v459, %v460
      %v462 = vrot.slane %v461, 1
      %v463 = vadd.f32 %v461, %v462
      %s464 = vtos %v463
      %vm465 = vcmp.eq.s32.totalorder %v376, 0
      %vm466 = vcmp.eq.s32.totalorder %v376, 1
      %v467 = vstv %s464
      %v468 = vsel %vm466, %v467, 0.0
      %v469 = vstv %s368
      %v470 = vsel %vm465, %v469, %v468
      %v471 = vld [vmem:[%s336] sm:$0xff]
      %v472 = vadd.f32 %v471, %v470
      %473 = vst [vmem:[%s336] sm:$0xff] %v472
      %p474 = scmp.lt.s32.totalorder %s34, 1
      %s475 = scalar_select %p474, %s34, 1
      %s476 = smul.addr %s475, 8
      %s477 = scalar_lea.vmem %s6, %s476
      // Predicated region
      $region41: #{transformer_loss.1} parent=35 // pred_check
        %p478 = pneg %p172
      $region42: #{transformer_loss.1} parent=35 // pred_check_branch
        %480 = sbr.rel (%p478) target = $region44
      $region43: #{transformer_loss.1} parent=35 // pred_region
        _
      $region44: #{transformer_loss.1} parent=35 // pred_fallthru
        _
    $region36: #{transformer_loss.1} parent=5 // pred_fallthru
      _
    %p481 = scmp.le.s32.totalorder 2, %s25
    // Predicated region
    $region45: #{transformer_loss.1} parent=5 // pred_check
      %p482 = pneg %p481
    $region46: #{transformer_loss.1} parent=5 // pred_check_branch
      %484 = sbr.rel (%p482) target = $region48
    $region47: #{transformer_loss.1} parent=5 // pred_region
      %s485 = ssub.s32 %s25, 2
      // Predicated region
      $region49: #{transformer_loss.1} parent=47 // pred_check
        %p486 = pneg %p178
      $region50: #{transformer_loss.1} parent=47 // pred_check_branch
        %488 = sbr.rel (%p486) target = $region52
      $region51: #{transformer_loss.1} parent=47 // pred_region
        %p489 = scmp.lt.s32.totalorder %s36, 1
        %s490 = scalar_select %p489, %s36, 1
        %s491 = smul.addr %s490, 8
        %s492 = scalar_lea.vmem %s6, %s491
      $region52: #{transformer_loss.1} parent=47 // pred_fallthru
        _
    $region48: #{transformer_loss.1} parent=5 // pred_fallthru
      _
  $region6: #{transformer_loss.1} parent=0 // loop_footer
    %s29 = sadd.s32 1, %s25
  $region7: #{transformer_loss.1} parent=0 // loop_footer_branch
    %24 = sbr.rel target = $region3
  $region8: #{transformer_loss.1} parent=0 // loop_exit
    _

</llo_original>
